<compile_context>
chip_gen: v7x
topology: tpu7x:2x2x1
jax: 0.10.0
libtpu: 0.0.40
codegen_flags: <defaults>
</compile_context>

<pallas_src>
import functools

import jax
import jax.numpy as jnp
from jax.experimental import pallas as pl
from jax.experimental.pallas import tpu as pltpu

_PENALTY = 1.0e30  # large finite "masked out" value (no inf in the datapath)


def _vq_argmin_kernel(wt_ref, et_ref, idx_ref, min_sc, arg_sc):
    # wt_ref : (TK, DA) f32  -- augmented codebook chunk  [-W | 0.5*(||w||^2+penalty)^T | 0]
    # et_ref : (DA, TN) f32  -- augmented latent tile     [E^T ; onehot(type)^T ; 0]
    # idx_ref: (1,  TN) i32  -- lane-dense encoding indices (written once, at the last chunk)
    # min_sc : (1,  TN) f32  -- running masked-min distance over K
    # arg_sc : (1,  TN) i32  -- running argmin over K
    k = pl.program_id(1)
    tk = wt_ref.shape[0]

    @pl.when(k == 0)
    def _():
        min_sc[...] = jnp.full_like(min_sc, jnp.inf)
        arg_sc[...] = jnp.zeros_like(arg_sc)

    # Fused masked distance for this K-chunk (up to a per-row constant + factor 0.5):
    #   d[c, n] = -w_c . e_n + 0.5*||w_c||^2 + 0.5*penalty(type_n, c)
    d = jnp.dot(wt_ref[...], et_ref[...], preferred_element_type=jnp.float32)  # (TK, TN)

    # Per-latent min over the chunk (sublane-axis reduce -> results are already lane-dense),
    # and the FIRST row index achieving it (matches argmin tie-breaking).
    cmin = jnp.min(d, axis=0, keepdims=True)                                   # (1, TN)
    row = jax.lax.broadcasted_iota(jnp.int32, d.shape, 0)                      # (TK, TN)
    carg = jnp.min(jnp.where(d == cmin, row, jnp.int32(2 ** 30)),
                   axis=0, keepdims=True)                                      # (1, TN)
    carg = carg + k * tk                                                       # global index

    better = cmin < min_sc[...]            # strict '<': earlier chunk wins ties (first-index)
    arg_sc[...] = jnp.where(better, carg, arg_sc[...])
    min_sc[...] = jnp.where(better, cmin, min_sc[...])

    @pl.when(k == pl.num_programs(1) - 1)
    def _():
        idx_ref[...] = arg_sc[...]


@functools.partial(jax.jit, static_argnames=("commitment_cost", "tile_n", "tile_k"))
def vector_quantizer_forward(x, e, weights, commitment_cost=0.25, tile_n=128, tile_k=128):
    """Returns (quantized, loss, encoding_indices) matching VectorQuantizer.forward."""
    N, D = e.shape
    K = weights.shape[0]
    tile_n = min(tile_n, N)
    tile_k = min(tile_k, K)
    assert N % tile_n == 0 and K % tile_k == 0, "N, K must tile evenly (synthetic kernel)"

    ef = e.astype(jnp.float32)
    wf = weights.astype(jnp.float32)

    # --- wrapper-side setup (cheap, runs once per call) -------------------------------
    # per-row class id: 0=C(5), 1=N(6), 2=O(7), 3=other
    atom = x[:, 0].astype(jnp.float32)
    cls = jnp.where(atom == 5.0, 0, jnp.where(atom == 6.0, 1, jnp.where(atom == 7.0, 2, 3)))
    cls_onehot = jax.nn.one_hot(cls, 4, dtype=jnp.float32)                      # (N, 4)

    # additive half-bias table (4, K): 0.5*||w_k||^2 inside the class slice, ~1e30 outside
    col = jnp.arange(K)[None, :]
    lo = jnp.array([0, 378, 434, 489])[:, None]
    hi = jnp.array([377, 433, 488, 511])[:, None]
    valid = (col >= lo) & (col < hi)                                            # (4, K)
    wsq = jnp.sum(wf * wf, axis=1)[None, :]                                     # (1, K)
    half_bias = 0.5 * wsq + jnp.where(valid, 0.0, _PENALTY)                     # (4, K)

    # Augmented operands so the masked distance is a single matmul in the kernel.
    # (||e_n||^2 is intentionally dropped: a per-row constant cannot change the argmin.)
    DA = ((D + 4 + 127) // 128) * 128  # pad contraction dim to a lane-aligned width
    aw_t = (jnp.zeros((K, DA), jnp.float32)
            .at[:, :D].set(-wf)
            .at[:, D:D + 4].set(half_bias.T))                                   # (K, DA)
    ae_t = (jnp.zeros((DA, N), jnp.float32)
            .at[:D, :].set(ef.T)
            .at[D:D + 4, :].set(cls_onehot.T))                                  # (DA, N)

    # --- Pallas kernel: nearest-valid-code search -------------------------------------
    grid = (N // tile_n, K // tile_k)  # reduction (K) axis last
    idx2d = pl.pallas_call(
        _vq_argmin_kernel,
        out_shape=jax.ShapeDtypeStruct((1, N), jnp.int32),
        grid_spec=pltpu.PrefetchScalarGridSpec(
            num_scalar_prefetch=0,
            grid=grid,
            in_specs=[
                pl.BlockSpec((tile_k, DA), lambda i, k: (k, 0)),   # codebook chunk
                pl.BlockSpec((DA, tile_n), lambda i, k: (0, i)),   # latent tile (const over k)
            ],
            out_specs=pl.BlockSpec((1, tile_n), lambda i, k: (0, i)),  # lane-dense indices
            scratch_shapes=[
                pltpu.VMEM((1, tile_n), jnp.float32),   # running min
                pltpu.VMEM((1, tile_n), jnp.int32),     # running argmin
            ],
        ),
        compiler_params=pltpu.CompilerParams(
            dimension_semantics=("parallel", "arbitrary")),
    )(aw_t, ae_t)

    idx = idx2d.reshape(-1)                         # (N,)

    # --- wrapper-side epilogue (per perf review: gather + scalar loss in XLA) ----------
    q = jnp.take(wf, idx, axis=0)                   # (N, D)
    mse = jnp.mean((q - ef) ** 2)
    # forward value: q_latent_loss + commitment_cost * e_latent_loss == (1 + beta) * mse
    loss = (1.0 + commitment_cost) * mse
    # straight-through: quantized = e + (quantized - e).detach() == quantized in value
    return q, loss, idx


def _reference_forward(x, e, weights, commitment_cost):
    """Pure-JAX reference mirroring the PyTorch module (for a sanity check)."""
    atom = x[:, 0:1]
    is_c, is_n, is_o = atom == 5.0, atom == 6.0, atom == 7.0
    lo = jnp.where(is_c, 0, jnp.where(is_n, 378, jnp.where(is_o, 434, 489)))
    hi = jnp.where(is_c, 377, jnp.where(is_n, 433, jnp.where(is_o, 488, 511)))
    d = (jnp.sum(e ** 2, axis=1, keepdims=True)
         + jnp.sum(weights ** 2, axis=1)[None, :]
         - 2.0 * e @ weights.T)
    col = jnp.arange(weights.shape[0])[None, :]
    d_masked = jnp.where((col >= lo) & (col < hi), d, jnp.inf)
    idx = jnp.argmin(d_masked, axis=1)
    q = weights[idx]
    loss = (1.0 + commitment_cost) * jnp.mean((q - e) ** 2)
    return q, loss, idx, d_masked


if __name__ == "__main__":
    key = jax.random.PRNGKey(0)
    k_atom, k_x, k_e, k_w = jax.random.split(key, 4)

    N, C, D, K = 256, 4, 64, 512
    commitment_cost = 0.25

    # x: (N, C) float, column 0 holds atom types drawn from {1, 5, 6, 7, 8}
    atom_choices = jnp.array([1.0, 5.0, 6.0, 7.0, 8.0], dtype=jnp.float32)
    atom = atom_choices[jax.random.randint(k_atom, (N,), 0, 5)]
    x = jax.random.normal(k_x, (N, C), dtype=jnp.float32)
    x = x.at[:, 0].set(atom)

    # e: (N, D) latents; codebook like nn.Embedding default init ~ N(0, 1)
    e = jax.random.normal(k_e, (N, D), dtype=jnp.float32)
    weights = jax.random.normal(k_w, (K, D), dtype=jnp.float32)

    q, loss, idx = vector_quantizer_forward(x, e, weights, commitment_cost)
    q, loss, idx = jax.block_until_ready((q, loss, idx))

    # sanity checks against a pure-JAX reference (tolerance-based: default-precision MXU
    # matmuls may legitimately flip an argmin at a numerical near-tie)
    q_ref, loss_ref, idx_ref, d_masked = _reference_forward(x, e, weights, commitment_cost)
    rows = jnp.arange(N)
    d_sel = d_masked[rows, idx]
    d_min = jnp.min(d_masked, axis=1)
    assert bool(jnp.all(jnp.isfinite(d_sel))), "index outside its per-atom-type codebook slice"
    assert bool(jnp.all(d_sel <= d_min + 1.0)), "selected code is not the nearest valid code"
    assert bool(jnp.allclose(q, weights[idx], rtol=1e-5, atol=1e-5)), "quantized mismatch"
    assert bool(jnp.allclose(loss, loss_ref, rtol=2e-3, atol=2e-3)), "loss mismatch"

    print("KERNEL_OK")
</pallas_src>

<mosaic_0001>
module attributes {stable_mosaic.version = 11 : i64} {
  func.func @_vq_argmin_kernel(%arg0: i32, %arg1: i32, %arg2: memref<128x128xf32, #tpu.memory_space<vmem>>, %arg3: memref<128x128xf32, #tpu.memory_space<vmem>>, %arg4: memref<1x128xi32, #tpu.memory_space<vmem>>, %arg5: memref<1x128xf32, #tpu.memory_space<vmem>>, %arg6: memref<1x128xi32, #tpu.memory_space<vmem>>) attributes {dimension_semantics = [#tpu.dimension_semantics<parallel>, #tpu.dimension_semantics<arbitrary>], iteration_bounds = array<i64: 2, 4>, scalar_prefetch = 0 : i64, scratch_operands = 2 : i64, tpu.core_type = #tpu.core_type<tc>, window_params = [{transform_indices = @transform_0, window_bounds = array<i64: 128, 128>}, {transform_indices = @transform_1, window_bounds = array<i64: 128, 128>}, {transform_indices = @transform_2, window_bounds = array<i64: 1, 128>}]} {
    %c0_i32 = arith.constant 0 : i32
    %0 = arith.cmpi eq, %arg1, %c0_i32 : i32
    %1 = arith.extui %0 : i1 to i32
    %c0_i32_0 = arith.constant 0 : i32
    %2 = arith.cmpi ne, %1, %c0_i32_0 : i32
    scf.if %2 {
      %cst_17 = arith.constant 0x7F800000 : f32
      %29 = vector.broadcast %cst_17 : f32 to vector<1x128xf32>
      %c0_18 = arith.constant 0 : index
      %c0_19 = arith.constant 0 : index
      %30 = vector.load %arg5[%c0_18, %c0_19] : memref<1x128xf32, #tpu.memory_space<vmem>>, vector<1x128xf32>
      tpu.vector_store %arg5[%c0_18, %c0_19], %29 {strides = array<i32>} : memref<1x128xf32, #tpu.memory_space<vmem>>, vector<1x128xf32>,
      %c0_i32_20 = arith.constant 0 : i32
      %31 = vector.broadcast %c0_i32_20 : i32 to vector<1x128xi32>
      %c0_21 = arith.constant 0 : index
      %c0_22 = arith.constant 0 : index
      %32 = vector.load %arg6[%c0_21, %c0_22] : memref<1x128xi32, #tpu.memory_space<vmem>>, vector<1x128xi32>
      tpu.vector_store %arg6[%c0_21, %c0_22], %31 {strides = array<i32>} : memref<1x128xi32, #tpu.memory_space<vmem>>, vector<1x128xi32>,
    } else {
    }
    %c0 = arith.constant 0 : index
    %c0_1 = arith.constant 0 : index
    %3 = vector.load %arg2[%c0, %c0_1] : memref<128x128xf32, #tpu.memory_space<vmem>>, vector<128x128xf32>
    %c0_2 = arith.constant 0 : index
    %c0_3 = arith.constant 0 : index
    %4 = vector.load %arg3[%c0_2, %c0_3] : memref<128x128xf32, #tpu.memory_space<vmem>>, vector<128x128xf32>
    %cst = arith.constant dense<0.000000e+00> : vector<128x128xf32>
    %5 = tpu.matmul %3, %4, %cst {dimension_numbers = #tpu.dot_dimension_numbers<[1], [0], [0], [1], [0, 0, 1, 1], [], []>} : vector<128x128xf32>, vector<128x128xf32>, vector<128x128xf32> -> vector<128x128xf32>
    %cst_4 = arith.constant dense<0x7F800000> : vector<128xf32>
    %6 = vector.multi_reduction <minimumf>, %5, %cst_4 [0] : vector<128x128xf32> to vector<128xf32>
    %7 = vector.shape_cast %6 : vector<128xf32> to vector<1x128xf32>
    %8 = tpu.iota {dimensions = array<i32: 0>} : vector<128x128xi32>
    %9 = vector.broadcast %7 : vector<1x128xf32> to vector<128x128xf32>
    %10 = arith.cmpf oeq, %5, %9 : vector<128x128xf32>
    %c1073741824_i32 = arith.constant 1073741824 : i32
    %11 = vector.broadcast %c1073741824_i32 : i32 to vector<128x128xi32>
    %12 = arith.select %10, %8, %11 : vector<128x128xi1>, vector<128x128xi32>
    %cst_5 = arith.constant dense<2147483647> : vector<128xi32>
    %13 = vector.multi_reduction <minsi>, %12, %cst_5 [0] : vector<128x128xi32> to vector<128xi32>
    %14 = vector.shape_cast %13 : vector<128xi32> to vector<1x128xi32>
    %c128_i32 = arith.constant 128 : i32
    %15 = arith.muli %arg1, %c128_i32 : i32
    %16 = vector.broadcast %15 : i32 to vector<1x128xi32>
    %17 = arith.addi %14, %16 : vector<1x128xi32>
    %c0_6 = arith.constant 0 : index
    %c0_7 = arith.constant 0 : index
    %18 = vector.load %arg5[%c0_6, %c0_7] : memref<1x128xf32, #tpu.memory_space<vmem>>, vector<1x128xf32>
    %19 = arith.cmpf olt, %7, %18 : vector<1x128xf32>
    %c0_8 = arith.constant 0 : index
    %c0_9 = arith.constant 0 : index
    %20 = vector.load %arg6[%c0_8, %c0_9] : memref<1x128xi32, #tpu.memory_space<vmem>>, vector<1x128xi32>
    %21 = arith.select %19, %17, %20 : vector<1x128xi1>, vector<1x128xi32>
    %c0_10 = arith.constant 0 : index
    %c0_11 = arith.constant 0 : index
    %22 = vector.load %arg6[%c0_10, %c0_11] : memref<1x128xi32, #tpu.memory_space<vmem>>, vector<1x128xi32>
    tpu.vector_store %arg6[%c0_10, %c0_11], %21 {strides = array<i32>} : memref<1x128xi32, #tpu.memory_space<vmem>>, vector<1x128xi32>,
    %c0_12 = arith.constant 0 : index
    %c0_13 = arith.constant 0 : index
    %23 = vector.load %arg5[%c0_12, %c0_13] : memref<1x128xf32, #tpu.memory_space<vmem>>, vector<1x128xf32>
    %24 = arith.select %19, %7, %23 : vector<1x128xi1>, vector<1x128xf32>
    %c0_14 = arith.constant 0 : index
    %c0_15 = arith.constant 0 : index
    %25 = vector.load %arg5[%c0_14, %c0_15] : memref<1x128xf32, #tpu.memory_space<vmem>>, vector<1x128xf32>
    tpu.vector_store %arg5[%c0_14, %c0_15], %24 {strides = array<i32>} : memref<1x128xf32, #tpu.memory_space<vmem>>, vector<1x128xf32>,
    %c3_i32 = arith.constant 3 : i32
    %26 = arith.cmpi eq, %arg1, %c3_i32 : i32
    %27 = arith.extui %26 : i1 to i32
    %c0_i32_16 = arith.constant 0 : i32
    %28 = arith.cmpi ne, %27, %c0_i32_16 : i32
    scf.if %28 {
      %c0_17 = arith.constant 0 : index
      %c0_18 = arith.constant 0 : index
      %29 = vector.load %arg6[%c0_17, %c0_18] : memref<1x128xi32, #tpu.memory_space<vmem>>, vector<1x128xi32>
      %c0_19 = arith.constant 0 : index
      %c0_20 = arith.constant 0 : index
      %30 = vector.load %arg4[%c0_19, %c0_20] : memref<1x128xi32, #tpu.memory_space<vmem>>, vector<1x128xi32>
      tpu.vector_store %arg4[%c0_19, %c0_20], %29 {strides = array<i32>} : memref<1x128xi32, #tpu.memory_space<vmem>>, vector<1x128xi32>,
    } else {
    }
    return
  }
  func.func @transform_0(%arg0: i32, %arg1: i32) -> (i32, i32) {
    %c0_i32 = arith.constant 0 : i32
    %c0_i32_0 = arith.constant 0 : i32
    return %arg1, %c0_i32 : i32, i32
  }
  func.func @transform_1(%arg0: i32, %arg1: i32) -> (i32, i32) {
    %c0_i32 = arith.constant 0 : i32
    %c0_i32_0 = arith.constant 0 : i32
    return %c0_i32, %arg0 : i32, i32
  }
  func.func @transform_2(%arg0: i32, %arg1: i32) -> (i32, i32) {
    %c0_i32 = arith.constant 0 : i32
    %c0_i32_0 = arith.constant 0 : i32
    return %c0_i32, %arg0 : i32, i32
  }
}

</mosaic_0001>

<llo_original>
// kernel: vector_quantizer_forward.1
$region0: #{vector_quantizer_forward.1}
  #allocation0 [shape = 'u32[]', space=smem, size = 0x4, offset = 0x4, fixed_abs, tag = 'smem constant byte address 0x4 - core index']
  #allocation1 [shape = 'u32[144,128]{1,0:T(1,128)}', space=vmem, size = 0x12000, scoped, tag = 'internal scratch']
  #allocation2 [shape = 'f32[1,128]{1,0:T(1,128)}', space=vmem, size = 0x200, scoped, tag = 'scratch operand']
  #allocation3 [shape = 's32[1,128]{1,0:T(1,128)}', space=vmem, size = 0x200, scoped, tag = 'scratch operand']
  %s0 = inlined_call_operand.vmem [shape: f32[512,128], index: 0, kind: input, shape index: {}]
  %s1 = inlined_call_operand.vmem [shape: f32[128,256], index: 1, kind: input, shape index: {}]
  %s2 = inlined_call_operand.vmem [shape: s32[1,256], index: 2, kind: output, shape index: {}]
  %s3 = sld [smem:[#allocation0]]
  $region87: #{vector_quantizer_forward.1} parent=0
    _
  %s5 = ssub.s32 1, %s3
  %s6 = scalar_select 0, %s5, %s3
  $region1: #{vector_quantizer_forward.1} parent=0
    #allocation4 [shape = 'u8[131072]{0}', space=vmem, size = 0x20000, scoped, tag = 'input window, operand 1']
    loop: start=0, step=1, limit=10
    $region2: #{vector_quantizer_forward.1} parent=1 // loop_pre_header
      _
    $region3: #{vector_quantizer_forward.1} parent=1 // loop_header
      %s8 = sphi 0, %s12
      %p9 = scmp.ge.s32.totalorder %s8, 10
      %s15 = sphi 0, %s27
      %s16 = sphi 0, %s23
      %s17 = sphi 0, %s15
      %s18 = sphi 0, %s16
      %s19 = sphi 0, %s17
      %s20 = sphi 0, %s18
      %s30 = sphi 0, %s32
      %s33 = sphi 0, %s30
      %s34 = sphi 0, %s33
      %s50 = sphi 0, %s34
      %s56 = sphi 0, %s58
      %s59 = sphi 0, %s56
      %s60 = sphi 0, %s59
      %s76 = sphi 0, %s60
      %s82 = sphi 0, %s84
      %s85 = sphi 0, %s82
      %s86 = sphi 0, %s85
      %s102 = sphi 0, %s86
    $region4: #{vector_quantizer_forward.1} parent=1 // loop_header_branch
      %11 = sbr.rel (%p9) target = $region8
    $region5: #{vector_quantizer_forward.1} parent=1 // loop_body
      %s13 = ssub.s32 %s8, 1
      %s14 = ssub.s32 %s8, 2
      %s21 = sadd.s32 1, %s16
      %p22 = scmp.ge.s32.totalorder %s21, 4
      %s23 = scalar_select %p22, 0, %s21
      %s24 = sadd.s32 1, %s15
      %s25 = scalar_select %p22, %s24, %s15
      %p26 = scmp.ge.s32.totalorder %s25, 2
      %s27 = scalar_select %p26, 0, %s25
      %s28 = ssub.s32 %s16, %s23
      %p29 = scmp.eq.s32.totalorder %s28, 0
      %s31 = sadd.s32 %s30, 1
      %s32 = scalar_select %p29, %s30, %s31
      %p35 = pneg %p29
      %p36 = scmp.eq.s32.totalorder %s8, 7
      %p37 = por %p35, %p36
      %p38 = scmp.ne.s32.totalorder %s30, %s33
      %p39 = scmp.eq.s32.totalorder %s8, 0
      %p40 = por %p38, %p39
      %p41 = scmp.ne.s32.totalorder %s30, %s33
      %p42 = scmp.eq.s32.totalorder %s13, 7
      %p43 = por %p41, %p42
      %p44 = scmp.ne.s32.totalorder %s33, %s34
      %p45 = scmp.eq.s32.totalorder %s13, 0
      %p46 = por %p44, %p45
      %p47 = scmp.ne.s32.totalorder %s33, %s34
      %p48 = scmp.eq.s32.totalorder %s14, 7
      %p49 = por %p47, %p48
      %p51 = scmp.ne.s32.totalorder %s34, %s50
      %p52 = scmp.eq.s32.totalorder %s14, 0
      %p53 = por %p51, %p52
      %s54 = ssub.s32 %s15, %s27
      %p55 = scmp.eq.s32.totalorder %s54, 0
      %s57 = sadd.s32 %s56, 1
      %s58 = scalar_select %p55, %s56, %s57
      %p61 = pneg %p55
      %p62 = scmp.eq.s32.totalorder %s8, 7
      %p63 = por %p61, %p62
      %p64 = scmp.ne.s32.totalorder %s56, %s59
      %p65 = scmp.eq.s32.totalorder %s8, 0
      %p66 = por %p64, %p65
      %p67 = scmp.ne.s32.totalorder %s56, %s59
      %p68 = scmp.eq.s32.totalorder %s13, 7
      %p69 = por %p67, %p68
      %p70 = scmp.ne.s32.totalorder %s59, %s60
      %p71 = scmp.eq.s32.totalorder %s13, 0
      %p72 = por %p70, %p71
      %p73 = scmp.ne.s32.totalorder %s59, %s60
      %p74 = scmp.eq.s32.totalorder %s14, 7
      %p75 = por %p73, %p74
      %p77 = scmp.ne.s32.totalorder %s60, %s76
      %p78 = scmp.eq.s32.totalorder %s14, 0
      %p79 = por %p77, %p78
      %s80 = ssub.s32 %s15, %s27
      %p81 = scmp.eq.s32.totalorder %s80, 0
      %s83 = sadd.s32 %s82, 1
      %s84 = scalar_select %p81, %s82, %s83
      %p87 = pneg %p81
      %p88 = scmp.eq.s32.totalorder %s8, 7
      %p89 = por %p87, %p88
      %p90 = scmp.ne.s32.totalorder %s82, %s85
      %p91 = scmp.eq.s32.totalorder %s8, 0
      %p92 = por %p90, %p91
      %p93 = scmp.ne.s32.totalorder %s82, %s85
      %p94 = scmp.eq.s32.totalorder %s13, 7
      %p95 = por %p93, %p94
      %p96 = scmp.ne.s32.totalorder %s85, %s86
      %p97 = scmp.eq.s32.totalorder %s13, 0
      %p98 = por %p96, %p97
      %p99 = scmp.ne.s32.totalorder %s85, %s86
      %p100 = scmp.eq.s32.totalorder %s14, 7
      %p101 = por %p99, %p100
      %p103 = scmp.ne.s32.totalorder %s86, %s102
      %p104 = scmp.eq.s32.totalorder %s14, 0
      %p105 = por %p103, %p104
      %p106 = scmp.le.s32.totalorder 1, %s8
      %p107 = scmp.lt.s32.totalorder %s8, 9
      %p108 = pnand %p106, %p107
      %p109 = pneg %p108
      // Predicated region
      $region9: #{vector_quantizer_forward.1} parent=5 // pred_check
        _
      $region10: #{vector_quantizer_forward.1} parent=5 // pred_check_branch
        %111 = sbr.rel (%p108) target = $region12
      $region11: #{vector_quantizer_forward.1} parent=5 // pred_region
        %s112 = ssub.s32 %s8, 1
      $region12: #{vector_quantizer_forward.1} parent=5 // pred_fallthru
        _
      %p113 = scmp.lt.s32.totalorder %s8, 8
      // Predicated region
      $region13: #{vector_quantizer_forward.1} parent=5 // pred_check
        %p114 = pneg %p113
      $region14: #{vector_quantizer_forward.1} parent=5 // pred_check_branch
        %116 = sbr.rel (%p114) target = $region16
      $region15: #{vector_quantizer_forward.1} parent=5 // pred_region
        // Predicated region
        $region17: #{vector_quantizer_forward.1} parent=15 // pred_check
          %p117 = pneg %p40
        $region18: #{vector_quantizer_forward.1} parent=15 // pred_check_branch
          %119 = sbr.rel (%p117) target = $region20
        $region19: #{vector_quantizer_forward.1} parent=15 // pred_region
          %s120 = smul.u32 16, %s16
          %p121 = scmp.lt.s32.totalorder %s120, 63
          %s122 = scalar_select %p121, %s120, 63
          %s123 = smul.addr %s122, 8
          %s124 = scalar_lea.vmem %s0, %s123
          %s125 = smul.u32 16, %s16
        $region20: #{vector_quantizer_forward.1} parent=15 // pred_fallthru
          _
        // Predicated region
        $region21: #{vector_quantizer_forward.1} parent=15 // pred_check
          %p126 = pneg %p66
        $region22: #{vector_quantizer_forward.1} parent=15 // pred_check_branch
          %128 = sbr.rel (%p126) target = $region24
        $region23: #{vector_quantizer_forward.1} parent=15 // pred_region
          %s129 = sand.u32 %s56, 1
          %s130 = sand.u32 %s56, 1
          %s131 = smul.addr %s130, 128
          %s132 = scalar_lea.vmem [#allocation4], %s131
          %s133 = smul.addr %s15, 8
          %s134 = scalar_lea.vmem %s1, %s133
          // Predicated region
          $region25: #{vector_quantizer_forward.1} parent=23 // pred_check
            _
          $region26: #{vector_quantizer_forward.1} parent=23 // pred_check_branch
            %136 = sbr.rel (0) target = $region28
          $region27: #{vector_quantizer_forward.1} parent=23 // pred_region
            // Predicated region
            $region29: #{vector_quantizer_forward.1} parent=27 // pred_check
              _
            $region30: #{vector_quantizer_forward.1} parent=27 // pred_check_branch
              %138 = sbr.rel (0) target = $region32
            $region31: #{vector_quantizer_forward.1} parent=27 // pred_region
              // Predicated region
              $region44: #{vector_quantizer_forward.1} parent=31 // pred_check
                _
              $region45: #{vector_quantizer_forward.1} parent=31 // pred_check_branch
                %183 = sbr.rel (0) target = $region47
              $region46: #{vector_quantizer_forward.1} parent=31 // pred_region
                loop: start=0, step=1, limit=1
                $region48: #{vector_quantizer_forward.1} parent=46 // loop_pre_header
                  _
                $region49: #{vector_quantizer_forward.1} parent=46 // loop_header
                  %s185 = sphi 0, %s189
                  %p186 = scmp.ge.s32.totalorder %s185, 1
                  %s190 = sphi %s134, %s134
                  %s191 = sphi %s132, %s132
                $region50: #{vector_quantizer_forward.1} parent=46 // loop_header_branch
                  %188 = sbr.rel (%p186) target = $region54
                $region51: #{vector_quantizer_forward.1} parent=46 // loop_body
                  %v192 = vld [vmem:[%s190] sm:$0xff]
                  %193 = vst [vmem:[%s191] sm:$0xff] %v192
                  %v194 = vld [vmem:[%s190 + $0x10] sm:$0xff]
                  %195 = vst [vmem:[%s191 + $0x8] sm:$0xff] %v194
                  %v196 = vld [vmem:[%s190 + $0x20] sm:$0xff]
                  %197 = vst [vmem:[%s191 + $0x10] sm:$0xff] %v196
                  %v198 = vld [vmem:[%s190 + $0x30] sm:$0xff]
                  %199 = vst [vmem:[%s191 + $0x18] sm:$0xff] %v198
                  %v200 = vld [vmem:[%s190 + $0x40] sm:$0xff]
                  %201 = vst [vmem:[%s191 + $0x20] sm:$0xff] %v200
                  %v202 = vld [vmem:[%s190 + $0x50] sm:$0xff]
                  %203 = vst [vmem:[%s191 + $0x28] sm:$0xff] %v202
                  %v204 = vld [vmem:[%s190 + $0x60] sm:$0xff]
                  %205 = vst [vmem:[%s191 + $0x30] sm:$0xff] %v204
                  %v206 = vld [vmem:[%s190 + $0x70] sm:$0xff]
                  %207 = vst [vmem:[%s191 + $0x38] sm:$0xff] %v206
                  %v208 = vld [vmem:[%s190 + $0x80] sm:$0xff]
                  %209 = vst [vmem:[%s191 + $0x40] sm:$0xff] %v208
                  %v210 = vld [vmem:[%s190 + $0x90] sm:$0xff]
                  %211 = vst [vmem:[%s191 + $0x48] sm:$0xff] %v210
                  %v212 = vld [vmem:[%s190 + $0xa0] sm:$0xff]
                  %213 = vst [vmem:[%s191 + $0x50] sm:$0xff] %v212
                  %v214 = vld [vmem:[%s190 + $0xb0] sm:$0xff]
                  %215 = vst [vmem:[%s191 + $0x58] sm:$0xff] %v214
                  %v216 = vld [vmem:[%s190 + $0xc0] sm:$0xff]
                  %217 = vst [vmem:[%s191 + $0x60] sm:$0xff] %v216
                  %v218 = vld [vmem:[%s190 + $0xd0] sm:$0xff]
                  %219 = vst [vmem:[%s191 + $0x68] sm:$0xff] %v218
                  %v220 = vld [vmem:[%s190 + $0xe0] sm:$0xff]
                  %221 = vst [vmem:[%s191 + $0x70] sm:$0xff] %v220
                  %v222 = vld [vmem:[%s190 + $0xf0] sm:$0xff]
                  %223 = vst [vmem:[%s191 + $0x78] sm:$0xff] %v222
                $region52: #{vector_quantizer_forward.1} parent=46 // loop_footer
                  %s189 = sadd.s32 1, %s185
                $region53: #{vector_quantizer_forward.1} parent=46 // loop_footer_branch
                  %184 = sbr.rel target = $region49
                $region54: #{vector_quantizer_forward.1} parent=46 // loop_exit
                  _
              $region47: #{vector_quantizer_forward.1} parent=31 // pred_fallthru
                _
              // Predicated region
              $region55: #{vector_quantizer_forward.1} parent=31 // pred_check
                _
              $region56: #{vector_quantizer_forward.1} parent=31 // pred_check_branch
                %225 = sbr.rel target = $region58
              $region57: #{vector_quantizer_forward.1} parent=31 // pred_region
                _
              $region58: #{vector_quantizer_forward.1} parent=31 // pred_fallthru
                _
            $region32: #{vector_quantizer_forward.1} parent=27 // pred_fallthru
              _
            // Predicated region
            $region33: #{vector_quantizer_forward.1} parent=27 // pred_check
              _
            $region34: #{vector_quantizer_forward.1} parent=27 // pred_check_branch
              %140 = sbr.rel target = $region36
            $region35: #{vector_quantizer_forward.1} parent=27 // pred_region
              loop: start=0, step=1, limit=1
              $region37: #{vector_quantizer_forward.1} parent=35 // loop_pre_header
                _
              $region38: #{vector_quantizer_forward.1} parent=35 // loop_header
                %s143 = sphi 0, %s147
                %p144 = scmp.ge.s32.totalorder %s143, 1
                %s148 = sphi %s134, %s134
                %s149 = sphi %s132, %s132
              $region39: #{vector_quantizer_forward.1} parent=35 // loop_header_branch
                %146 = sbr.rel (%p144) target = $region43
              $region40: #{vector_quantizer_forward.1} parent=35 // loop_body
                %v150 = vld [vmem:[%s148] sm:$0xff]
                %151 = vst [vmem:[%s149] sm:$0xff] %v150
                %v152 = vld [vmem:[%s148 + $0x10] sm:$0xff]
                %153 = vst [vmem:[%s149 + $0x8] sm:$0xff] %v152
                %v154 = vld [vmem:[%s148 + $0x20] sm:$0xff]
                %155 = vst [vmem:[%s149 + $0x10] sm:$0xff] %v154
                %v156 = vld [vmem:[%s148 + $0x30] sm:$0xff]
                %157 = vst [vmem:[%s149 + $0x18] sm:$0xff] %v156
                %v158 = vld [vmem:[%s148 + $0x40] sm:$0xff]
                %159 = vst [vmem:[%s149 + $0x20] sm:$0xff] %v158
                %v160 = vld [vmem:[%s148 + $0x50] sm:$0xff]
                %161 = vst [vmem:[%s149 + $0x28] sm:$0xff] %v160
                %v162 = vld [vmem:[%s148 + $0x60] sm:$0xff]
                %163 = vst [vmem:[%s149 + $0x30] sm:$0xff] %v162
                %v164 = vld [vmem:[%s148 + $0x70] sm:$0xff]
                %165 = vst [vmem:[%s149 + $0x38] sm:$0xff] %v164
                %v166 = vld [vmem:[%s148 + $0x80] sm:$0xff]
                %167 = vst [vmem:[%s149 + $0x40] sm:$0xff] %v166
                %v168 = vld [vmem:[%s148 + $0x90] sm:$0xff]
                %169 = vst [vmem:[%s149 + $0x48] sm:$0xff] %v168
                %v170 = vld [vmem:[%s148 + $0xa0] sm:$0xff]
                %171 = vst [vmem:[%s149 + $0x50] sm:$0xff] %v170
                %v172 = vld [vmem:[%s148 + $0xb0] sm:$0xff]
                %173 = vst [vmem:[%s149 + $0x58] sm:$0xff] %v172
                %v174 = vld [vmem:[%s148 + $0xc0] sm:$0xff]
                %175 = vst [vmem:[%s149 + $0x60] sm:$0xff] %v174
                %v176 = vld [vmem:[%s148 + $0xd0] sm:$0xff]
                %177 = vst [vmem:[%s149 + $0x68] sm:$0xff] %v176
                %v178 = vld [vmem:[%s148 + $0xe0] sm:$0xff]
                %179 = vst [vmem:[%s149 + $0x70] sm:$0xff] %v178
                %v180 = vld [vmem:[%s148 + $0xf0] sm:$0xff]
                %181 = vst [vmem:[%s149 + $0x78] sm:$0xff] %v180
              $region41: #{vector_quantizer_forward.1} parent=35 // loop_footer
                %s147 = sadd.s32 1, %s143
              $region42: #{vector_quantizer_forward.1} parent=35 // loop_footer_branch
                %142 = sbr.rel target = $region38
              $region43: #{vector_quantizer_forward.1} parent=35 // loop_exit
                _
            $region36: #{vector_quantizer_forward.1} parent=27 // pred_fallthru
              _
          $region28: #{vector_quantizer_forward.1} parent=23 // pred_fallthru
            _
          %226 = vnop
        $region24: #{vector_quantizer_forward.1} parent=15 // pred_fallthru
          _
      $region16: #{vector_quantizer_forward.1} parent=5 // pred_fallthru
        _
      %p227 = scmp.le.s32.totalorder 1, %s8
      %p228 = scmp.lt.s32.totalorder %s8, 9
      %p229 = pnand %p227, %p228
      %p230 = pneg %p229
      // Predicated region
      $region59: #{vector_quantizer_forward.1} parent=5 // pred_check
        _
      $region60: #{vector_quantizer_forward.1} parent=5 // pred_check_branch
        %232 = sbr.rel (%p229) target = $region62
      $region61: #{vector_quantizer_forward.1} parent=5 // pred_region
        %s233 = ssub.s32 %s8, 1
        %s234 = sand.u32 %s59, 1
        %s235 = sand.u32 %s59, 1
        %s236 = smul.addr %s235, 128
        %s237 = scalar_lea.vmem [#allocation4], %s236
        // Predicated region
        $region63: #{vector_quantizer_forward.1} parent=61 // pred_check
          %p238 = pneg %p72
        $region64: #{vector_quantizer_forward.1} parent=61 // pred_check_branch
          %240 = sbr.rel (%p238) target = $region66
        $region65: #{vector_quantizer_forward.1} parent=61 // pred_region
          _
        $region66: #{vector_quantizer_forward.1} parent=61 // pred_fallthru
          _
        %s241 = smul.u32 16, %s18
        %p242 = scmp.lt.s32.totalorder %s241, 63
        %s243 = scalar_select %p242, %s241, 63
        %s244 = smul.addr %s243, 8
        %s245 = scalar_lea.vmem %s0, %s244
        %p246 = pneg %p46
        %p247 = pneg %p43
        %s248 = sand.u32 %s59, 1
        %s249 = sand.u32 %s59, 1
        %s250 = smul.addr %s249, 128
        %s251 = scalar_lea.vmem [#allocation4], %s250
        %p252 = pneg %p72
        %p253 = pneg %p69
        %p254 = pneg %p98
        %p255 = pneg %p95
        %p256 = scmp.lt.s32.totalorder %s17, 1
        %s257 = scalar_select %p256, %s17, 1
        %s258 = scalar_lea.vmem %s2, %s257
        %s259 = smul.u32 16, %s18
        %p260 = scmp.lt.s32.totalorder %s259, 63
        %s261 = scalar_select %p260, %s259, 63
        %s262 = smul.addr %s261, 8
        %s263 = scalar_lea.vmem %s0, %s262
        %s264 = smul.u32 16, %s18
        %p265 = scmp.lt.s32.totalorder %s17, 1
        %s266 = scalar_select %p265, %s17, 1
        %s267 = scalar_lea.vmem %s2, %s266
        %p268 = scmp.eq.s32.totalorder %s18, 0
        // Predicated region
        $region67: #{vector_quantizer_forward.1} parent=61 // pred_check
          %p269 = pneg %p268
        $region68: #{vector_quantizer_forward.1} parent=61 // pred_check_branch
          %271 = sbr.rel (%p269) target = $region70
        $region69: #{vector_quantizer_forward.1} parent=61 // pred_region
          %272 = vst [vmem:[#allocation2] sm:$0x1] inf
          %273 = vst [vmem:[#allocation3] sm:$0x1] 0
        $region70: #{vector_quantizer_forward.1} parent=61 // pred_fallthru
          _
        %v274 = vld [vmem:[%s263] sm:$0xff]
        %v275 = vld [vmem:[%s263 + $0x8] sm:$0xff]
        %v276 = vld [vmem:[%s263 + $0x10] sm:$0xff]
        %v277 = vld [vmem:[%s263 + $0x18] sm:$0xff]
        %v278 = vld [vmem:[%s263 + $0x20] sm:$0xff]
        %v279 = vld [vmem:[%s263 + $0x28] sm:$0xff]
        %v280 = vld [vmem:[%s263 + $0x30] sm:$0xff]
        %v281 = vld [vmem:[%s263 + $0x38] sm:$0xff]
        %v282 = vld [vmem:[%s263 + $0x40] sm:$0xff]
        %v283 = vld [vmem:[%s263 + $0x48] sm:$0xff]
        %v284 = vld [vmem:[%s263 + $0x50] sm:$0xff]
        %v285 = vld [vmem:[%s263 + $0x58] sm:$0xff]
        %v286 = vld [vmem:[%s263 + $0x60] sm:$0xff]
        %v287 = vld [vmem:[%s263 + $0x68] sm:$0xff]
        %v288 = vld [vmem:[%s263 + $0x70] sm:$0xff]
        %v289 = vld [vmem:[%s263 + $0x78] sm:$0xff]
        %v290 = vld [vmem:[%s237] sm:$0xff]
        %v291 = vld [vmem:[%s237 + $0x8] sm:$0xff]
        %v292 = vld [vmem:[%s237 + $0x10] sm:$0xff]
        %v293 = vld [vmem:[%s237 + $0x18] sm:$0xff]
        %v294 = vld [vmem:[%s237 + $0x20] sm:$0xff]
        %v295 = vld [vmem:[%s237 + $0x28] sm:$0xff]
        %v296 = vld [vmem:[%s237 + $0x30] sm:$0xff]
        %v297 = vld [vmem:[%s237 + $0x38] sm:$0xff]
        %v298 = vld [vmem:[%s237 + $0x40] sm:$0xff]
        %v299 = vld [vmem:[%s237 + $0x48] sm:$0xff]
        %v300 = vld [vmem:[%s237 + $0x50] sm:$0xff]
        %v301 = vld [vmem:[%s237 + $0x58] sm:$0xff]
        %v302 = vld [vmem:[%s237 + $0x60] sm:$0xff]
        %v303 = vld [vmem:[%s237 + $0x68] sm:$0xff]
        %v304 = vld [vmem:[%s237 + $0x70] sm:$0xff]
        %v305 = vld [vmem:[%s237 + $0x78] sm:$0xff]
        %306 = vmatprep.subr.mxu0 0.0
        %307 = vmatpush1.msra.mxu0 %v290
        %308 = vmatprep.subr.mxu0 0.0
        %309 = vmatpush1.msra.mxu0 %v291
        %310 = vmatprep.subr.mxu0 0.0
        %311 = vmatpush1.msra.mxu0 %v292
        %312 = vmatprep.subr.mxu0 0.0
        %313 = vmatpush1.msra.mxu0 %v293
        %314 = vmatprep.subr.mxu0 0.0
        %315 = vmatpush1.msra.mxu0 %v294
        %316 = vmatprep.subr.mxu0 0.0
        %317 = vmatpush1.msra.mxu0 %v295
        %318 = vmatprep.subr.mxu0 0.0
        %319 = vmatpush1.msra.mxu0 %v296
        %320 = vmatprep.subr.mxu0 0.0
        %321 = vmatpush1.msra.mxu0 %v297
        %322 = vmatprep.subr.mxu0 0.0
        %323 = vmatpush1.msra.mxu0 %v298
        %324 = vmatprep.subr.mxu0 0.0
        %325 = vmatpush1.msra.mxu0 %v299
        %326 = vmatprep.subr.mxu0 0.0
        %327 = vmatpush1.msra.mxu0 %v300
        %328 = vmatprep.subr.mxu0 0.0
        %329 = vmatpush1.msra.mxu0 %v301
        %330 = vmatprep.subr.mxu0 0.0
        %331 = vmatpush1.msra.mxu0 %v302
        %332 = vmatprep.subr.mxu0 0.0
        %333 = vmatpush1.msra.mxu0 %v303
        %334 = vmatprep.subr.mxu0 0.0
        %335 = vmatpush1.msra.mxu0 %v304
        %336 = vmatprep.subr.mxu0 0.0
        %337 = vmatpush1.msra.mxu0 %v305
        %338 = vmatprep.subr.mxu0 0.0
        %339 = vmatpush1.msra.mxu0 0.0
        %340 = vmatprep.subr.mxu0 0.0
        %341 = vmatpush1.msra.mxu0 0.0
        %342 = vmatprep.subr.mxu0 0.0
        %343 = vmatpush1.msra.mxu0 0.0
        %344 = vmatprep.subr.mxu0 0.0
        %345 = vmatpush1.msra.mxu0 0.0
        %346 = vmatprep.subr.mxu0 0.0
        %347 = vmatpush1.msra.mxu0 0.0
        %348 = vmatprep.subr.mxu0 0.0
        %349 = vmatpush1.msra.mxu0 0.0
        %350 = vmatprep.subr.mxu0 0.0
        %351 = vmatpush1.msra.mxu0 0.0
        %352 = vmatprep.subr.mxu0 0.0
        %353 = vmatpush1.msra.mxu0 0.0
        %354 = vmatprep.subr.mxu0 0.0
        %355 = vmatpush1.msra.mxu0 0.0
        %356 = vmatprep.subr.mxu0 0.0
        %357 = vmatpush1.msra.mxu0 0.0
        %358 = vmatprep.subr.mxu0 0.0
        %359 = vmatpush1.msra.mxu0 0.0
        %360 = vmatprep.subr.mxu0 0.0
        %361 = vmatpush1.msra.mxu0 0.0
        %362 = vmatprep.subr.mxu0 0.0
        %363 = vmatpush1.msra.mxu0 0.0
        %364 = vmatprep.subr.mxu0 0.0
        %365 = vmatpush1.msra.mxu0 0.0
        %366 = vmatprep.subr.mxu0 0.0
        %367 = vmatpush1.msra.mxu0 0.0
        %368 = vmatprep.subr.mxu0 0.0
        %369 = vmatpush1.msra.mxu0 0.0
        %370 = vmatprep.mubr.f32.mxu0 0.0
        %371 = vmatmul.mubr.f32.gmra.mrb[0].mxu0 %v274
        %v372 = vpop.f32.mrb[0].mxu0
        %v373 = vadd.f32 0.0, %v372
        %v374 = vpop.f32.mrb[0].mxu0
        %375 = vmatprep.mubr.f32.mxu0 0.0
        %376 = vmatmul.mubr.f32.gmra.mrb[0].mxu0 %v275
        %v377 = vpop.f32.mrb[0].mxu0
        %v378 = vadd.f32 0.0, %v377
        %v379 = vpop.f32.mrb[0].mxu0
        %380 = vmatprep.mubr.f32.mxu0 0.0
        %381 = vmatmul.mubr.f32.gmra.mrb[0].mxu0 %v276
        %v382 = vpop.f32.mrb[0].mxu0
        %v383 = vadd.f32 0.0, %v382
        %v384 = vpop.f32.mrb[0].mxu0
        %385 = vmatprep.mubr.f32.mxu0 0.0
        %386 = vmatmul.mubr.f32.gmra.mrb[0].mxu0 %v277
        %v387 = vpop.f32.mrb[0].mxu0
        %v388 = vadd.f32 0.0, %v387
        %v389 = vpop.f32.mrb[0].mxu0
        %390 = vmatprep.mubr.f32.mxu0 0.0
        %391 = vmatmul.mubr.f32.gmra.mrb[0].mxu0 %v278
        %v392 = vpop.f32.mrb[0].mxu0
        %v393 = vadd.f32 0.0, %v392
        %v394 = vpop.f32.mrb[0].mxu0
        %395 = vmatprep.mubr.f32.mxu0 0.0
        %396 = vmatmul.mubr.f32.gmra.mrb[0].mxu0 %v279
        %v397 = vpop.f32.mrb[0].mxu0
        %v398 = vadd.f32 0.0, %v397
        %v399 = vpop.f32.mrb[0].mxu0
        %400 = vmatprep.mubr.f32.mxu0 0.0
        %401 = vmatmul.mubr.f32.gmra.mrb[0].mxu0 %v280
        %v402 = vpop.f32.mrb[0].mxu0
        %v403 = vadd.f32 0.0, %v402
        %v404 = vpop.f32.mrb[0].mxu0
        %405 = vmatprep.mubr.f32.mxu0 0.0
        %406 = vmatmul.mubr.f32.gmra.mrb[0].mxu0 %v281
        %v407 = vpop.f32.mrb[0].mxu0
        %v408 = vadd.f32 0.0, %v407
        %v409 = vpop.f32.mrb[0].mxu0
        %410 = vmatprep.mubr.f32.mxu0 0.0
        %411 = vmatmul.mubr.f32.gmra.mrb[0].mxu0 %v282
        %v412 = vpop.f32.mrb[0].mxu0
        %v413 = vadd.f32 0.0, %v412
        %v414 = vpop.f32.mrb[0].mxu0
        %415 = vmatprep.mubr.f32.mxu0 0.0
        %416 = vmatmul.mubr.f32.gmra.mrb[0].mxu0 %v283
        %v417 = vpop.f32.mrb[0].mxu0
        %v418 = vadd.f32 0.0, %v417
        %v419 = vpop.f32.mrb[0].mxu0
        %420 = vmatprep.mubr.f32.mxu0 0.0
        %421 = vmatmul.mubr.f32.gmra.mrb[0].mxu0 %v284
        %v422 = vpop.f32.mrb[0].mxu0
        %v423 = vadd.f32 0.0, %v422
        %v424 = vpop.f32.mrb[0].mxu0
        %425 = vmatprep.mubr.f32.mxu0 0.0
        %426 = vmatmul.mubr.f32.gmra.mrb[0].mxu0 %v285
        %v427 = vpop.f32.mrb[0].mxu0
        %v428 = vadd.f32 0.0, %v427
        %v429 = vpop.f32.mrb[0].mxu0
        %430 = vmatprep.mubr.f32.mxu0 0.0
        %431 = vmatmul.mubr.f32.gmra.mrb[0].mxu0 %v286
        %v432 = vpop.f32.mrb[0].mxu0
        %v433 = vadd.f32 0.0, %v432
        %v434 = vpop.f32.mrb[0].mxu0
        %435 = vmatprep.mubr.f32.mxu0 0.0
        %436 = vmatmul.mubr.f32.gmra.mrb[0].mxu0 %v287
        %v437 = vpop.f32.mrb[0].mxu0
        %v438 = vadd.f32 0.0, %v437
        %v439 = vpop.f32.mrb[0].mxu0
        %440 = vmatprep.mubr.f32.mxu0 0.0
        %441 = vmatmul.mubr.f32.gmra.mrb[0].mxu0 %v288
        %v442 = vpop.f32.mrb[0].mxu0
        %v443 = vadd.f32 0.0, %v442
        %v444 = vpop.f32.mrb[0].mxu0
        %445 = vmatprep.mubr.f32.mxu0 0.0
        %446 = vmatmul.mubr.f32.gmra.mrb[0].mxu0 %v289
        %v447 = vpop.f32.mrb[0].mxu0
        %v448 = vadd.f32 0.0, %v447
        %v449 = vpop.f32.mrb[0].mxu0
        %450 = vdwg.mxu0
        %v451 = vmin.f32 %v373, %v393
        %v452 = vmin.f32 %v378, %v398
        %v453 = vmin.f32 %v383, %v403
        %v454 = vmin.f32 %v388, %v408
        %v455 = vmin.f32 %v451, %v413
        %v456 = vmin.f32 %v452, %v418
        %v457 = vmin.f32 %v453, %v423
        %v458 = vmin.f32 %v454, %v428
        %v459 = vmin.f32 %v455, %v433
        %v460 = vmin.f32 %v456, %v438
        %v461 = vmin.f32 %v457, %v443
        %v462 = vmin.f32 %v458, %v448
        %v463 = vmin.f32 %v459, %v460
        %v464 = vmin.f32 %v461, %v462
        %v465 = vmin.f32 %v463, %v464
        %v466 = vrot.slane %v465, 4
        %v467 = vmin.f32 %v465, %v466
        %v468 = vrot.slane %v467, 2
        %v469 = vmin.f32 %v467, %v468
        %v470 = vrot.slane %v469, 1
        %v471 = vmin.f32 %v469, %v470
        %v472 = vlaneseq
        %v473 = vshrl.u32 %v472, 7
        %v474 = vadd.s32 %v473, 8
        %v475 = vadd.s32 %v473, 16
        %v476 = vadd.s32 %v473, 24
        %v477 = vadd.s32 %v473, 32
        %v478 = vadd.s32 %v473, 40
        %v479 = vadd.s32 %v473, 48
        %v480 = vadd.s32 %v473, 56
        %v481 = vadd.s32 %v473, 64
        %v482 = vadd.s32 %v473, 72
        %v483 = vadd.s32 %v473, 80
        %v484 = vadd.s32 %v473, 88
        %v485 = vadd.s32 %v473, 96
        %v486 = vadd.s32 %v473, 104
        %v487 = vadd.s32 %v473, 112
        %v488 = vadd.s32 %v473, 120
        %vm489 = vcmp.eq.f32.partialorder %v373, %v471
        %vm490 = vcmp.eq.f32.partialorder %v378, %v471
        %vm491 = vcmp.eq.f32.partialorder %v383, %v471
        %vm492 = vcmp.eq.f32.partialorder %v388, %v471
        %vm493 = vcmp.eq.f32.partialorder %v393, %v471
        %vm494 = vcmp.eq.f32.partialorder %v398, %v471
        %vm495 = vcmp.eq.f32.partialorder %v403, %v471
        %vm496 = vcmp.eq.f32.partialorder %v408, %v471
        %vm497 = vcmp.eq.f32.partialorder %v413, %v471
        %vm498 = vcmp.eq.f32.partialorder %v418, %v471
        %vm499 = vcmp.eq.f32.partialorder %v423, %v471
        %vm500 = vcmp.eq.f32.partialorder %v428, %v471
        %vm501 = vcmp.eq.f32.partialorder %v433, %v471
        %vm502 = vcmp.eq.f32.partialorder %v438, %v471
        %vm503 = vcmp.eq.f32.partialorder %v443, %v471
        %vm504 = vcmp.eq.f32.partialorder %v448, %v471
        %v505 = vsel %vm489, %v473, 1073741824
        %v506 = vsel %vm490, %v474, 1073741824
        %v507 = vsel %vm491, %v475, 1073741824
        %v508 = vsel %vm492, %v476, 1073741824
        %v509 = vsel %vm493, %v477, 1073741824
        %v510 = vsel %vm494, %v478, 1073741824
        %v511 = vsel %vm495, %v479, 1073741824
        %v512 = vsel %vm496, %v480, 1073741824
        %v513 = vsel %vm497, %v481, 1073741824
        %v514 = vsel %vm498, %v482, 1073741824
        %v515 = vsel %vm499, %v483, 1073741824
        %v516 = vsel %vm500, %v484, 1073741824
        %v517 = vsel %vm501, %v485, 1073741824
        %v518 = vsel %vm502, %v486, 1073741824
        %v519 = vsel %vm503, %v487, 1073741824
        %v520 = vsel %vm504, %v488, 1073741824
        %vm521 = vcmp.lt.s32.totalorder %v505, %v509
        %v522 = vsel %vm521, %v505, %v509
        %vm523 = vcmp.lt.s32.totalorder %v506, %v510
        %v524 = vsel %vm523, %v506, %v510
        %vm525 = vcmp.lt.s32.totalorder %v507, %v511
        %v526 = vsel %vm525, %v507, %v511
        %vm527 = vcmp.lt.s32.totalorder %v508, %v512
        %v528 = vsel %vm527, %v508, %v512
        %vm529 = vcmp.lt.s32.totalorder %v522, %v513
        %v530 = vsel %vm529, %v522, %v513
        %vm531 = vcmp.lt.s32.totalorder %v524, %v514
        %v532 = vsel %vm531, %v524, %v514
        %vm533 = vcmp.lt.s32.totalorder %v526, %v515
        %v534 = vsel %vm533, %v526, %v515
        %vm535 = vcmp.lt.s32.totalorder %v528, %v516
        %v536 = vsel %vm535, %v528, %v516
        %vm537 = vcmp.lt.s32.totalorder %v530, %v517
        %v538 = vsel %vm537, %v530, %v517
        %vm539 = vcmp.lt.s32.totalorder %v532, %v518
        %v540 = vsel %vm539, %v532, %v518
        %vm541 = vcmp.lt.s32.totalorder %v534, %v519
        %v542 = vsel %vm541, %v534, %v519
        %vm543 = vcmp.lt.s32.totalorder %v536, %v520
        %v544 = vsel %vm543, %v536, %v520
        %vm545 = vcmp.lt.s32.totalorder %v538, %v540
        %v546 = vsel %vm545, %v538, %v540
        %vm547 = vcmp.lt.s32.totalorder %v542, %v544
        %v548 = vsel %vm547, %v542, %v544
        %vm549 = vcmp.lt.s32.totalorder %v546, %v548
        %v550 = vsel %vm549, %v546, %v548
        %v551 = vrot.slane %v550, 4
        %vm552 = vcmp.lt.s32.totalorder %v550, %v551
        %v553 = vsel %vm552, %v550, %v551
        %v554 = vrot.slane %v553, 2
        %vm555 = vcmp.lt.s32.totalorder %v553, %v554
        %v556 = vsel %vm555, %v553, %v554
        %v557 = vrot.slane %v556, 1
        %vm558 = vcmp.lt.s32.totalorder %v556, %v557
        %v559 = vsel %vm558, %v556, %v557
        %s560 = smul.u32 %s18, 128
        %v561 = vstv %s560
        %v562 = vadd.s32 %v559, %v561
        %v563 = vld [vmem:[#allocation2] sm:$0x1]
        %vm564 = vcmp.lt.f32.partialorder %v471, %v563
        %v565 = vld [vmem:[#allocation3] sm:$0x1]
        %v566 = vsel %vm564, %v562, %v565
        %567 = vst [vmem:[#allocation3] sm:$0x1] %v566
        %v568 = vld [vmem:[#allocation2] sm:$0x1]
        %v569 = vsel %vm564, %v471, %v568
        %570 = vst [vmem:[#allocation2] sm:$0x1] %v569
        %p571 = scmp.eq.s32.totalorder %s18, 3
        // Predicated region
        $region71: #{vector_quantizer_forward.1} parent=61 // pred_check
          %p572 = pneg %p571
        $region72: #{vector_quantizer_forward.1} parent=61 // pred_check_branch
          %574 = sbr.rel (%p572) target = $region74
        $region73: #{vector_quantizer_forward.1} parent=61 // pred_region
          %v575 = vld [vmem:[#allocation3] sm:$0x1]
          %576 = vst [vmem:[%s267] sm:$0x1] %v575
        $region74: #{vector_quantizer_forward.1} parent=61 // pred_fallthru
          _
        %p577 = scmp.lt.s32.totalorder %s17, 1
        %s578 = scalar_select %p577, %s17, 1
        %s579 = scalar_lea.vmem %s2, %s578
        // Predicated region
        $region75: #{vector_quantizer_forward.1} parent=61 // pred_check
          %p580 = pneg %p95
        $region76: #{vector_quantizer_forward.1} parent=61 // pred_check_branch
          %582 = sbr.rel (%p580) target = $region78
        $region77: #{vector_quantizer_forward.1} parent=61 // pred_region
          _
        $region78: #{vector_quantizer_forward.1} parent=61 // pred_fallthru
          _
      $region62: #{vector_quantizer_forward.1} parent=5 // pred_fallthru
        _
      %p583 = scmp.le.s32.totalorder 2, %s8
      // Predicated region
      $region79: #{vector_quantizer_forward.1} parent=5 // pred_check
        %p584 = pneg %p583
      $region80: #{vector_quantizer_forward.1} parent=5 // pred_check_branch
        %586 = sbr.rel (%p584) target = $region82
      $region81: #{vector_quantizer_forward.1} parent=5 // pred_region
        %s587 = ssub.s32 %s8, 2
        // Predicated region
        $region83: #{vector_quantizer_forward.1} parent=81 // pred_check
          %p588 = pneg %p101
        $region84: #{vector_quantizer_forward.1} parent=81 // pred_check_branch
          %590 = sbr.rel (%p588) target = $region86
        $region85: #{vector_quantizer_forward.1} parent=81 // pred_region
          %p591 = scmp.lt.s32.totalorder %s19, 1
          %s592 = scalar_select %p591, %s19, 1
          %s593 = scalar_lea.vmem %s2, %s592
        $region86: #{vector_quantizer_forward.1} parent=81 // pred_fallthru
          _
      $region82: #{vector_quantizer_forward.1} parent=5 // pred_fallthru
        _
    $region6: #{vector_quantizer_forward.1} parent=1 // loop_footer
      %s12 = sadd.s32 1, %s8
    $region7: #{vector_quantizer_forward.1} parent=1 // loop_footer_branch
      %7 = sbr.rel target = $region3
    $region8: #{vector_quantizer_forward.1} parent=1 // loop_exit
      _

</llo_original>
